<compile_context>
chip_gen: v7x
topology: tpu7x:2x2x1
jax: 0.10.0
libtpu: 0.0.40
codegen_flags: <defaults>
</compile_context>

<pallas_src>
import jax
import jax.numpy as jnp
from jax import lax
from jax.experimental import pallas as pl
from jax.experimental.pallas import tpu as pltpu

FEATURE = 8
HIDDEN = 16
TIMESTEP = 4
NGATES = 4
LANES = 128              # one 128-lane block carries all gates / the LSTM state
GBLK = LANES // NGATES   # 32 lanes per gate: lanes [g*32, g*32+HIDDEN) live, rest 0


def _cell(hx, c_prev, w, b, live):
    """One LSTM cell with a single fused K=128 x N=128 matmul.

    hx:     (batch, 128) f32 LHS; h in lanes [0:HIDDEN), input in the next lanes,
            exact zeros elsewhere (so only the live rows of `w` contribute).
    c_prev: (batch, 128) f32; live lanes [0:HIDDEN), dead lanes may hold bounded junk.
    w:      (128, 128) bf16 fused weights, gate-packed columns (zeros in dead cols).
    b:      (batch, 128) f32, pre-broadcast, gate-packed (zeros in dead lanes).
    live:   (batch, 128) f32 mask of the HIDDEN live state lanes.
    """
    z = jnp.dot(hx.astype(jnp.bfloat16), w,
                preferred_element_type=jnp.float32) + b        # (batch, 128)
    # One activation pass per kind over the whole vreg; gates then aligned to
    # the state lanes [0:HIDDEN) with XLU rolls (off the VALU/EUP critical slots).
    sig = 0.5 * jnp.tanh(0.5 * z) + 0.5     # i @ lanes 0.., f @ 32.., o @ 96..
    tz = jnp.tanh(z)                        # g @ lanes 64..
    i_g = sig                                                     # already aligned
    f_g = pltpu.roll(sig, shift=LANES - 1 * GBLK, axis=1)         # lane 32 -> 0
    g_g = pltpu.roll(tz,  shift=LANES - 2 * GBLK, axis=1)         # lane 64 -> 0
    o_g = pltpu.roll(sig, shift=LANES - 3 * GBLK, axis=1)         # lane 96 -> 0
    c_new = f_g * c_prev + i_g * g_g        # live lanes exact; dead lanes bounded junk
    h_new = (o_g * jnp.tanh(c_new)) * live  # dead lanes forced to exactly 0
    return h_new, c_new


def _lstm_kernel(x_ref, w0_ref, b0_ref, w1_ref, b1_ref, wfc_ref, bfc_ref,
                 out_ref):
    """x: (TIMESTEP, batch, 128) pre-laid-out input; weights fused / gate-packed
    by prepare_kernel_params.  out: (batch, 1) = fc(h_layer1 at t = TIMESTEP-1)."""
    batch = out_ref.shape[0]

    # Loop-invariant hoists (each fused W is 128x128 bf16 = 8 vregs; biases are
    # broadcast exactly once instead of per unrolled cell).
    w0 = w0_ref[...]
    w1 = w1_ref[...]
    b0 = jnp.broadcast_to(b0_ref[...], (batch, LANES))
    b1 = jnp.broadcast_to(b1_ref[...], (batch, LANES))
    lane = lax.broadcasted_iota(jnp.int32, (batch, LANES), 1)
    live = (lane < HIDDEN).astype(jnp.float32)

    h0 = jnp.zeros((batch, LANES), jnp.float32)
    c0 = jnp.zeros((batch, LANES), jnp.float32)
    h1 = jnp.zeros((batch, LANES), jnp.float32)
    c1 = jnp.zeros((batch, LANES), jnp.float32)

    # Fully unrolled recurrence: state stays register-resident; the LLO scheduler
    # can overlap layer-1 of step t with layer-0 of step t+1.
    for t in range(TIMESTEP):
        x_t = x_ref[t]                                    # (batch, 128) leading-axis load
        h0, c0 = _cell(h0 + x_t, c0, w0, b0, live)        # layer 0, K = 128
        hx1 = h1 + pltpu.roll(h0, shift=HIDDEN, axis=1)   # h0 -> lanes [HIDDEN:2*HIDDEN)
        h1, c1 = _cell(hx1, c1, w1, b1, live)             # layer 1, K = 128

    # Final Linear(16,1) as a lane reduction (avoids an N=1 matmul); dead lanes
    # of h1 and wfc are exactly zero so they contribute nothing.
    out_ref[...] = (jnp.sum(h1 * wfc_ref[...], axis=-1, keepdims=True)
                    + bfc_ref[...])


def _pack_gates(w):
    """(K, 4*HIDDEN) gate-packed [i,f,g,o] -> (K, 128): gate g lands in lanes
    [g*GBLK, g*GBLK + HIDDEN), zeros elsewhere (dead output cols/bias lanes = 0)."""
    k = w.shape[0]
    w4 = w.reshape(k, NGATES, HIDDEN)
    out = jnp.zeros((k, NGATES, GBLK), jnp.float32).at[:, :, :HIDDEN].set(w4)
    return out.reshape(k, NGATES * GBLK)


def prepare_kernel_params(params):
    """One-time re-layout of raw (PyTorch-style) params into the fused,
    gate-packed bf16 layout the kernel consumes.  Done outside the forward path."""
    # Layer 0 LHS frame: lanes [0:16) = h0, lanes [16:24) = x_t  -> K = 128.
    w0 = jnp.zeros((LANES, LANES), jnp.float32)
    w0 = w0.at[:HIDDEN].set(_pack_gates(params["whh0"]))
    w0 = w0.at[HIDDEN:HIDDEN + FEATURE].set(_pack_gates(params["wih0"]))
    # Layer 1 LHS frame: lanes [0:16) = h1, lanes [16:32) = h0   -> K = 128.
    w1 = jnp.zeros((LANES, LANES), jnp.float32)
    w1 = w1.at[:HIDDEN].set(_pack_gates(params["whh1"]))
    w1 = w1.at[HIDDEN:2 * HIDDEN].set(_pack_gates(params["wih1"]))
    # fc weight as a (1, 128) row for the lane-reduction dot product.
    wfc = jnp.zeros((1, LANES), jnp.float32).at[:, :HIDDEN].set(params["wfc"].T)
    return dict(w0=w0.astype(jnp.bfloat16), b0=_pack_gates(params["b0"]),
                w1=w1.astype(jnp.bfloat16), b1=_pack_gates(params["b1"]),
                wfc=wfc, bfc=params["bfc"])


def lstm_forward(x, kparams):
    """x: (batch, seq, FEATURE) -> (batch, 1), matching the PyTorch forward."""
    batch, seq, feat = x.shape
    assert feat == FEATURE
    assert seq >= TIMESTEP, f"need seq >= {TIMESTEP}, got {seq}"

    # Only the first TIMESTEP steps can affect the output -> slice before the
    # call so dead timesteps are never DMA'd.  Lay x out time-major with the
    # features placed at lanes [HIDDEN:HIDDEN+FEATURE) so the kernel's layer-0
    # LHS is simply h_prev + x_t (no concat, no sub-tile slice) with K = 128.
    x_tm = jnp.transpose(x[:, :TIMESTEP, :], (1, 0, 2)).astype(jnp.float32)
    xk = jnp.zeros((TIMESTEP, batch, LANES), jnp.float32)
    xk = xk.at[:, :, HIDDEN:HIDDEN + FEATURE].set(x_tm)

    inputs = (xk, kparams["w0"], kparams["b0"], kparams["w1"], kparams["b1"],
              kparams["wfc"], kparams["bfc"])
    vmem = pl.BlockSpec(memory_space=pltpu.MemorySpace.VMEM)

    # Gridless single-core call: total resident data ~70 KB, far under the VMEM
    # limit on v5e/v6e/v7x, so no tiling/pipelining is introduced.
    # TODO(synk): when batch is scaled up, add a grid over batch with
    # dimension_semantics=("parallel",) to use both v7x TensorCores, and in a
    # serving loop amortize / cross-call-prefetch the ~65 KB weight DMA.
    return pl.pallas_call(
        _lstm_kernel,
        out_shape=jax.ShapeDtypeStruct((batch, 1), jnp.float32),
        in_specs=[vmem] * len(inputs),
        out_specs=vmem,
    )(*inputs)


def init_params(key):
    """Deterministic init mimicking PyTorch's U(-1/sqrt(hidden), 1/sqrt(hidden)),
    stored pre-transposed: W_ih as (in_dim, 4*hidden), gate order [i,f,g,o]."""
    bound = 1.0 / jnp.sqrt(jnp.float32(HIDDEN))
    keys = jax.random.split(key, 10)

    def u(k, shape):
        return jax.random.uniform(k, shape, jnp.float32, -bound, bound)

    wih0 = u(keys[0], (FEATURE, 4 * HIDDEN))
    whh0 = u(keys[1], (HIDDEN, 4 * HIDDEN))
    b0 = u(keys[2], (1, 4 * HIDDEN)) + u(keys[3], (1, 4 * HIDDEN))   # b_ih + b_hh
    wih1 = u(keys[4], (HIDDEN, 4 * HIDDEN))
    whh1 = u(keys[5], (HIDDEN, 4 * HIDDEN))
    b1 = u(keys[6], (1, 4 * HIDDEN)) + u(keys[7], (1, 4 * HIDDEN))
    wfc = u(keys[8], (HIDDEN, 1))
    bfc = u(keys[9], (1, 1))
    return dict(wih0=wih0, whh0=whh0, b0=b0,
                wih1=wih1, whh1=whh1, b1=b1,
                wfc=wfc, bfc=bfc)


def lstm_reference(x, params):
    """Pure-JAX reference of the same forward (for correctness check)."""
    x_tmajor = jnp.transpose(x, (1, 0, 2)).astype(jnp.float32)
    batch = x.shape[0]

    def cell(x_t, h_prev, c_prev, wih, whh, b):
        z = x_t @ wih + h_prev @ whh + b
        i = jax.nn.sigmoid(z[:, 0 * HIDDEN:1 * HIDDEN])
        f = jax.nn.sigmoid(z[:, 1 * HIDDEN:2 * HIDDEN])
        g = jnp.tanh(z[:, 2 * HIDDEN:3 * HIDDEN])
        o = jax.nn.sigmoid(z[:, 3 * HIDDEN:4 * HIDDEN])
        c = f * c_prev + i * g
        h = o * jnp.tanh(c)
        return h, c

    def step(carry, x_t):
        h0, c0, h1, c1 = carry
        h0, c0 = cell(x_t, h0, c0, params["wih0"], params["whh0"], params["b0"])
        h1, c1 = cell(h0, h1, c1, params["wih1"], params["whh1"], params["b1"])
        return (h0, c0, h1, c1), h1

    z = jnp.zeros((batch, HIDDEN), jnp.float32)
    _, hs = lax.scan(step, (z, z, z, z), x_tmajor)    # (seq, batch, hidden)
    return hs[TIMESTEP - 1] @ params["wfc"] + params["bfc"]


if __name__ == "__main__":
    key = jax.random.PRNGKey(0)
    k_x, k_p = jax.random.split(key)

    batch, seq = 2, 6                              # x: (2, 6, 8); only t < 4 matters
    x = jax.random.normal(k_x, (batch, seq, FEATURE), jnp.float32)
    params = init_params(k_p)
    kparams = prepare_kernel_params(params)        # one-time weight re-layout

    out = lstm_forward(x, kparams)
    out = jax.block_until_ready(out)
    assert out.shape == (batch, 1)

    # Reference uses the same bf16-rounded matmul weights the kernel stores; the
    # remaining divergence is bf16-level LHS rounding (MXU default precision vs
    # the kernel's explicit bf16 cast), hence the modest tolerance.
    ref_params = dict(params)
    for name in ("wih0", "whh0", "wih1", "whh1"):
        ref_params[name] = params[name].astype(jnp.bfloat16).astype(jnp.float32)
    ref = lstm_reference(x, ref_params)
    assert jnp.allclose(out, ref, atol=1e-2, rtol=1e-2)

    print("KERNEL_OK")
</pallas_src>

<mosaic_0001>
module attributes {stable_mosaic.version = 11 : i64} {
  func.func @_lstm_kernel(%arg0: memref<4x2x128xf32, #tpu.memory_space<vmem>>, %arg1: memref<128x128xbf16, #tpu.memory_space<vmem>>, %arg2: memref<1x128xf32, #tpu.memory_space<vmem>>, %arg3: memref<128x128xbf16, #tpu.memory_space<vmem>>, %arg4: memref<1x128xf32, #tpu.memory_space<vmem>>, %arg5: memref<1x128xf32, #tpu.memory_space<vmem>>, %arg6: memref<1x1xf32, #tpu.memory_space<vmem>>, %arg7: memref<2x1xf32, #tpu.memory_space<vmem>>) attributes {dimension_semantics = [], scalar_prefetch = 0 : i64, scratch_operands = 0 : i64, tpu.core_type = #tpu.core_type<tc>} {
    %c0 = arith.constant 0 : index
    %c0_0 = arith.constant 0 : index
    %0 = vector.load %arg1[%c0, %c0_0] : memref<128x128xbf16, #tpu.memory_space<vmem>>, vector<128x128xbf16>
    %c0_1 = arith.constant 0 : index
    %c0_2 = arith.constant 0 : index
    %1 = vector.load %arg3[%c0_1, %c0_2] : memref<128x128xbf16, #tpu.memory_space<vmem>>, vector<128x128xbf16>
    %c0_3 = arith.constant 0 : index
    %c0_4 = arith.constant 0 : index
    %2 = vector.load %arg2[%c0_3, %c0_4] : memref<1x128xf32, #tpu.memory_space<vmem>>, vector<1x128xf32>
    %3 = vector.shape_cast %2 : vector<1x128xf32> to vector<1x128xf32>
    %4 = vector.broadcast %3 : vector<1x128xf32> to vector<2x128xf32>
    %c0_5 = arith.constant 0 : index
    %c0_6 = arith.constant 0 : index
    %5 = vector.load %arg4[%c0_5, %c0_6] : memref<1x128xf32, #tpu.memory_space<vmem>>, vector<1x128xf32>
    %6 = vector.shape_cast %5 : vector<1x128xf32> to vector<1x128xf32>
    %7 = vector.broadcast %6 : vector<1x128xf32> to vector<2x128xf32>
    %8 = tpu.iota {dimensions = array<i32: 1>} : vector<2x128xi32>
    %c16_i32 = arith.constant 16 : i32
    %9 = vector.broadcast %c16_i32 : i32 to vector<2x128xi32>
    %10 = arith.cmpi slt, %8, %9 : vector<2x128xi32>
    %11 = arith.extui %10 : vector<2x128xi1> to vector<2x128xi32>
    %12 = arith.sitofp %11 : vector<2x128xi32> to vector<2x128xf32>
    %cst = arith.constant 0.000000e+00 : f32
    %13 = vector.broadcast %cst : f32 to vector<2x128xf32>
    %cst_7 = arith.constant 0.000000e+00 : f32
    %14 = vector.broadcast %cst_7 : f32 to vector<2x128xf32>
    %cst_8 = arith.constant 0.000000e+00 : f32
    %15 = vector.broadcast %cst_8 : f32 to vector<2x128xf32>
    %cst_9 = arith.constant 0.000000e+00 : f32
    %16 = vector.broadcast %cst_9 : f32 to vector<2x128xf32>
    %c0_10 = arith.constant 0 : index
    %c0_11 = arith.constant 0 : index
    %c0_12 = arith.constant 0 : index
    %17 = vector.load %arg0[%c0_10, %c0_11, %c0_12] : memref<4x2x128xf32, #tpu.memory_space<vmem>>, vector<1x2x128xf32>
    %18 = vector.shape_cast %17 : vector<1x2x128xf32> to vector<2x128xf32>
    %19 = arith.addf %13, %18 : vector<2x128xf32>
    %20 = arith.truncf %19 : vector<2x128xf32> to vector<2x128xbf16>
    %cst_13 = arith.constant dense<0.000000e+00> : vector<2x128xf32>
    %21 = tpu.matmul %20, %0, %cst_13 {dimension_numbers = #tpu.dot_dimension_numbers<[1], [0], [0], [1], [0, 0, 1, 1], [], []>} : vector<2x128xbf16>, vector<128x128xbf16>, vector<2x128xf32> -> vector<2x128xf32>
    %22 = arith.addf %21, %4 : vector<2x128xf32>
    %cst_14 = arith.constant 5.000000e-01 : f32
    %23 = vector.broadcast %cst_14 : f32 to vector<2x128xf32>
    %24 = arith.mulf %23, %22 : vector<2x128xf32>
    %25 = math.tanh %24 : vector<2x128xf32>
    %cst_15 = arith.constant 5.000000e-01 : f32
    %26 = vector.broadcast %cst_15 : f32 to vector<2x128xf32>
    %27 = arith.mulf %26, %25 : vector<2x128xf32>
    %cst_16 = arith.constant 5.000000e-01 : f32
    %28 = vector.broadcast %cst_16 : f32 to vector<2x128xf32>
    %29 = arith.addf %27, %28 : vector<2x128xf32>
    %30 = math.tanh %22 : vector<2x128xf32>
    %c96_i32 = arith.constant 96 : i32
    %31 = tpu.dynamic_rotate %29 by %c96_i32 dim 1 : vector<2x128xf32>, i32 -> vector<2x128xf32>
    %c64_i32 = arith.constant 64 : i32
    %32 = tpu.dynamic_rotate %30 by %c64_i32 dim 1 : vector<2x128xf32>, i32 -> vector<2x128xf32>
    %c32_i32 = arith.constant 32 : i32
    %33 = tpu.dynamic_rotate %29 by %c32_i32 dim 1 : vector<2x128xf32>, i32 -> vector<2x128xf32>
    %34 = arith.mulf %31, %14 : vector<2x128xf32>
    %35 = arith.mulf %29, %32 : vector<2x128xf32>
    %36 = arith.addf %34, %35 : vector<2x128xf32>
    %37 = math.tanh %36 : vector<2x128xf32>
    %38 = arith.mulf %33, %37 : vector<2x128xf32>
    %39 = arith.mulf %38, %12 : vector<2x128xf32>
    %c16_i32_17 = arith.constant 16 : i32
    %40 = tpu.dynamic_rotate %39 by %c16_i32_17 dim 1 : vector<2x128xf32>, i32 -> vector<2x128xf32>
    %41 = arith.addf %15, %40 : vector<2x128xf32>
    %42 = arith.truncf %41 : vector<2x128xf32> to vector<2x128xbf16>
    %cst_18 = arith.constant dense<0.000000e+00> : vector<2x128xf32>
    %43 = tpu.matmul %42, %1, %cst_18 {dimension_numbers = #tpu.dot_dimension_numbers<[1], [0], [0], [1], [0, 0, 1, 1], [], []>} : vector<2x128xbf16>, vector<128x128xbf16>, vector<2x128xf32> -> vector<2x128xf32>
    %44 = arith.addf %43, %7 : vector<2x128xf32>
    %cst_19 = arith.constant 5.000000e-01 : f32
    %45 = vector.broadcast %cst_19 : f32 to vector<2x128xf32>
    %46 = arith.mulf %45, %44 : vector<2x128xf32>
    %47 = math.tanh %46 : vector<2x128xf32>
    %cst_20 = arith.constant 5.000000e-01 : f32
    %48 = vector.broadcast %cst_20 : f32 to vector<2x128xf32>
    %49 = arith.mulf %48, %47 : vector<2x128xf32>
    %cst_21 = arith.constant 5.000000e-01 : f32
    %50 = vector.broadcast %cst_21 : f32 to vector<2x128xf32>
    %51 = arith.addf %49, %50 : vector<2x128xf32>
    %52 = math.tanh %44 : vector<2x128xf32>
    %c96_i32_22 = arith.constant 96 : i32
    %53 = tpu.dynamic_rotate %51 by %c96_i32_22 dim 1 : vector<2x128xf32>, i32 -> vector<2x128xf32>
    %c64_i32_23 = arith.constant 64 : i32
    %54 = tpu.dynamic_rotate %52 by %c64_i32_23 dim 1 : vector<2x128xf32>, i32 -> vector<2x128xf32>
    %c32_i32_24 = arith.constant 32 : i32
    %55 = tpu.dynamic_rotate %51 by %c32_i32_24 dim 1 : vector<2x128xf32>, i32 -> vector<2x128xf32>
    %56 = arith.mulf %53, %16 : vector<2x128xf32>
    %57 = arith.mulf %51, %54 : vector<2x128xf32>
    %58 = arith.addf %56, %57 : vector<2x128xf32>
    %59 = math.tanh %58 : vector<2x128xf32>
    %60 = arith.mulf %55, %59 : vector<2x128xf32>
    %61 = arith.mulf %60, %12 : vector<2x128xf32>
    %c1 = arith.constant 1 : index
    %c0_25 = arith.constant 0 : index
    %c0_26 = arith.constant 0 : index
    %62 = vector.load %arg0[%c1, %c0_25, %c0_26] : memref<4x2x128xf32, #tpu.memory_space<vmem>>, vector<1x2x128xf32>
    %63 = vector.shape_cast %62 : vector<1x2x128xf32> to vector<2x128xf32>
    %64 = arith.addf %39, %63 : vector<2x128xf32>
    %65 = arith.truncf %64 : vector<2x128xf32> to vector<2x128xbf16>
    %cst_27 = arith.constant dense<0.000000e+00> : vector<2x128xf32>
    %66 = tpu.matmul %65, %0, %cst_27 {dimension_numbers = #tpu.dot_dimension_numbers<[1], [0], [0], [1], [0, 0, 1, 1], [], []>} : vector<2x128xbf16>, vector<128x128xbf16>, vector<2x128xf32> -> vector<2x128xf32>
    %67 = arith.addf %66, %4 : vector<2x128xf32>
    %cst_28 = arith.constant 5.000000e-01 : f32
    %68 = vector.broadcast %cst_28 : f32 to vector<2x128xf32>
    %69 = arith.mulf %68, %67 : vector<2x128xf32>
    %70 = math.tanh %69 : vector<2x128xf32>
    %cst_29 = arith.constant 5.000000e-01 : f32
    %71 = vector.broadcast %cst_29 : f32 to vector<2x128xf32>
    %72 = arith.mulf %71, %70 : vector<2x128xf32>
    %cst_30 = arith.constant 5.000000e-01 : f32
    %73 = vector.broadcast %cst_30 : f32 to vector<2x128xf32>
    %74 = arith.addf %72, %73 : vector<2x128xf32>
    %75 = math.tanh %67 : vector<2x128xf32>
    %c96_i32_31 = arith.constant 96 : i32
    %76 = tpu.dynamic_rotate %74 by %c96_i32_31 dim 1 : vector<2x128xf32>, i32 -> vector<2x128xf32>
    %c64_i32_32 = arith.constant 64 : i32
    %77 = tpu.dynamic_rotate %75 by %c64_i32_32 dim 1 : vector<2x128xf32>, i32 -> vector<2x128xf32>
    %c32_i32_33 = arith.constant 32 : i32
    %78 = tpu.dynamic_rotate %74 by %c32_i32_33 dim 1 : vector<2x128xf32>, i32 -> vector<2x128xf32>
    %79 = arith.mulf %76, %36 : vector<2x128xf32>
    %80 = arith.mulf %74, %77 : vector<2x128xf32>
    %81 = arith.addf %79, %80 : vector<2x128xf32>
    %82 = math.tanh %81 : vector<2x128xf32>
    %83 = arith.mulf %78, %82 : vector<2x128xf32>
    %84 = arith.mulf %83, %12 : vector<2x128xf32>
    %c16_i32_34 = arith.constant 16 : i32
    %85 = tpu.dynamic_rotate %84 by %c16_i32_34 dim 1 : vector<2x128xf32>, i32 -> vector<2x128xf32>
    %86 = arith.addf %61, %85 : vector<2x128xf32>
    %87 = arith.truncf %86 : vector<2x128xf32> to vector<2x128xbf16>
    %cst_35 = arith.constant dense<0.000000e+00> : vector<2x128xf32>
    %88 = tpu.matmul %87, %1, %cst_35 {dimension_numbers = #tpu.dot_dimension_numbers<[1], [0], [0], [1], [0, 0, 1, 1], [], []>} : vector<2x128xbf16>, vector<128x128xbf16>, vector<2x128xf32> -> vector<2x128xf32>
    %89 = arith.addf %88, %7 : vector<2x128xf32>
    %cst_36 = arith.constant 5.000000e-01 : f32
    %90 = vector.broadcast %cst_36 : f32 to vector<2x128xf32>
    %91 = arith.mulf %90, %89 : vector<2x128xf32>
    %92 = math.tanh %91 : vector<2x128xf32>
    %cst_37 = arith.constant 5.000000e-01 : f32
    %93 = vector.broadcast %cst_37 : f32 to vector<2x128xf32>
    %94 = arith.mulf %93, %92 : vector<2x128xf32>
    %cst_38 = arith.constant 5.000000e-01 : f32
    %95 = vector.broadcast %cst_38 : f32 to vector<2x128xf32>
    %96 = arith.addf %94, %95 : vector<2x128xf32>
    %97 = math.tanh %89 : vector<2x128xf32>
    %c96_i32_39 = arith.constant 96 : i32
    %98 = tpu.dynamic_rotate %96 by %c96_i32_39 dim 1 : vector<2x128xf32>, i32 -> vector<2x128xf32>
    %c64_i32_40 = arith.constant 64 : i32
    %99 = tpu.dynamic_rotate %97 by %c64_i32_40 dim 1 : vector<2x128xf32>, i32 -> vector<2x128xf32>
    %c32_i32_41 = arith.constant 32 : i32
    %100 = tpu.dynamic_rotate %96 by %c32_i32_41 dim 1 : vector<2x128xf32>, i32 -> vector<2x128xf32>
    %101 = arith.mulf %98, %58 : vector<2x128xf32>
    %102 = arith.mulf %96, %99 : vector<2x128xf32>
    %103 = arith.addf %101, %102 : vector<2x128xf32>
    %104 = math.tanh %103 : vector<2x128xf32>
    %105 = arith.mulf %100, %104 : vector<2x128xf32>
    %106 = arith.mulf %105, %12 : vector<2x128xf32>
    %c2 = arith.constant 2 : index
    %c0_42 = arith.constant 0 : index
    %c0_43 = arith.constant 0 : index
    %107 = vector.load %arg0[%c2, %c0_42, %c0_43] : memref<4x2x128xf32, #tpu.memory_space<vmem>>, vector<1x2x128xf32>
    %108 = vector.shape_cast %107 : vector<1x2x128xf32> to vector<2x128xf32>
    %109 = arith.addf %84, %108 : vector<2x128xf32>
    %110 = arith.truncf %109 : vector<2x128xf32> to vector<2x128xbf16>
    %cst_44 = arith.constant dense<0.000000e+00> : vector<2x128xf32>
    %111 = tpu.matmul %110, %0, %cst_44 {dimension_numbers = #tpu.dot_dimension_numbers<[1], [0], [0], [1], [0, 0, 1, 1], [], []>} : vector<2x128xbf16>, vector<128x128xbf16>, vector<2x128xf32> -> vector<2x128xf32>
    %112 = arith.addf %111, %4 : vector<2x128xf32>
    %cst_45 = arith.constant 5.000000e-01 : f32
    %113 = vector.broadcast %cst_45 : f32 to vector<2x128xf32>
    %114 = arith.mulf %113, %112 : vector<2x128xf32>
    %115 = math.tanh %114 : vector<2x128xf32>
    %cst_46 = arith.constant 5.000000e-01 : f32
    %116 = vector.broadcast %cst_46 : f32 to vector<2x128xf32>
    %117 = arith.mulf %116, %115 : vector<2x128xf32>
    %cst_47 = arith.constant 5.000000e-01 : f32
    %118 = vector.broadcast %cst_47 : f32 to vector<2x128xf32>
    %119 = arith.addf %117, %118 : vector<2x128xf32>
    %120 = math.tanh %112 : vector<2x128xf32>
    %c96_i32_48 = arith.constant 96 : i32
    %121 = tpu.dynamic_rotate %119 by %c96_i32_48 dim 1 : vector<2x128xf32>, i32 -> vector<2x128xf32>
    %c64_i32_49 = arith.constant 64 : i32
    %122 = tpu.dynamic_rotate %120 by %c64_i32_49 dim 1 : vector<2x128xf32>, i32 -> vector<2x128xf32>
    %c32_i32_50 = arith.constant 32 : i32
    %123 = tpu.dynamic_rotate %119 by %c32_i32_50 dim 1 : vector<2x128xf32>, i32 -> vector<2x128xf32>
    %124 = arith.mulf %121, %81 : vector<2x128xf32>
    %125 = arith.mulf %119, %122 : vector<2x128xf32>
    %126 = arith.addf %124, %125 : vector<2x128xf32>
    %127 = math.tanh %126 : vector<2x128xf32>
    %128 = arith.mulf %123, %127 : vector<2x128xf32>
    %129 = arith.mulf %128, %12 : vector<2x128xf32>
    %c16_i32_51 = arith.constant 16 : i32
    %130 = tpu.dynamic_rotate %129 by %c16_i32_51 dim 1 : vector<2x128xf32>, i32 -> vector<2x128xf32>
    %131 = arith.addf %106, %130 : vector<2x128xf32>
    %132 = arith.truncf %131 : vector<2x128xf32> to vector<2x128xbf16>
    %cst_52 = arith.constant dense<0.000000e+00> : vector<2x128xf32>
    %133 = tpu.matmul %132, %1, %cst_52 {dimension_numbers = #tpu.dot_dimension_numbers<[1], [0], [0], [1], [0, 0, 1, 1], [], []>} : vector<2x128xbf16>, vector<128x128xbf16>, vector<2x128xf32> -> vector<2x128xf32>
    %134 = arith.addf %133, %7 : vector<2x128xf32>
    %cst_53 = arith.constant 5.000000e-01 : f32
    %135 = vector.broadcast %cst_53 : f32 to vector<2x128xf32>
    %136 = arith.mulf %135, %134 : vector<2x128xf32>
    %137 = math.tanh %136 : vector<2x128xf32>
    %cst_54 = arith.constant 5.000000e-01 : f32
    %138 = vector.broadcast %cst_54 : f32 to vector<2x128xf32>
    %139 = arith.mulf %138, %137 : vector<2x128xf32>
    %cst_55 = arith.constant 5.000000e-01 : f32
    %140 = vector.broadcast %cst_55 : f32 to vector<2x128xf32>
    %141 = arith.addf %139, %140 : vector<2x128xf32>
    %142 = math.tanh %134 : vector<2x128xf32>
    %c96_i32_56 = arith.constant 96 : i32
    %143 = tpu.dynamic_rotate %141 by %c96_i32_56 dim 1 : vector<2x128xf32>, i32 -> vector<2x128xf32>
    %c64_i32_57 = arith.constant 64 : i32
    %144 = tpu.dynamic_rotate %142 by %c64_i32_57 dim 1 : vector<2x128xf32>, i32 -> vector<2x128xf32>
    %c32_i32_58 = arith.constant 32 : i32
    %145 = tpu.dynamic_rotate %141 by %c32_i32_58 dim 1 : vector<2x128xf32>, i32 -> vector<2x128xf32>
    %146 = arith.mulf %143, %103 : vector<2x128xf32>
    %147 = arith.mulf %141, %144 : vector<2x128xf32>
    %148 = arith.addf %146, %147 : vector<2x128xf32>
    %149 = math.tanh %148 : vector<2x128xf32>
    %150 = arith.mulf %145, %149 : vector<2x128xf32>
    %151 = arith.mulf %150, %12 : vector<2x128xf32>
    %c3 = arith.constant 3 : index
    %c0_59 = arith.constant 0 : index
    %c0_60 = arith.constant 0 : index
    %152 = vector.load %arg0[%c3, %c0_59, %c0_60] : memref<4x2x128xf32, #tpu.memory_space<vmem>>, vector<1x2x128xf32>
    %153 = vector.shape_cast %152 : vector<1x2x128xf32> to vector<2x128xf32>
    %154 = arith.addf %129, %153 : vector<2x128xf32>
    %155 = arith.truncf %154 : vector<2x128xf32> to vector<2x128xbf16>
    %cst_61 = arith.constant dense<0.000000e+00> : vector<2x128xf32>
    %156 = tpu.matmul %155, %0, %cst_61 {dimension_numbers = #tpu.dot_dimension_numbers<[1], [0], [0], [1], [0, 0, 1, 1], [], []>} : vector<2x128xbf16>, vector<128x128xbf16>, vector<2x128xf32> -> vector<2x128xf32>
    %157 = arith.addf %156, %4 : vector<2x128xf32>
    %cst_62 = arith.constant 5.000000e-01 : f32
    %158 = vector.broadcast %cst_62 : f32 to vector<2x128xf32>
    %159 = arith.mulf %158, %157 : vector<2x128xf32>
    %160 = math.tanh %159 : vector<2x128xf32>
    %cst_63 = arith.constant 5.000000e-01 : f32
    %161 = vector.broadcast %cst_63 : f32 to vector<2x128xf32>
    %162 = arith.mulf %161, %160 : vector<2x128xf32>
    %cst_64 = arith.constant 5.000000e-01 : f32
    %163 = vector.broadcast %cst_64 : f32 to vector<2x128xf32>
    %164 = arith.addf %162, %163 : vector<2x128xf32>
    %165 = math.tanh %157 : vector<2x128xf32>
    %c96_i32_65 = arith.constant 96 : i32
    %166 = tpu.dynamic_rotate %164 by %c96_i32_65 dim 1 : vector<2x128xf32>, i32 -> vector<2x128xf32>
    %c64_i32_66 = arith.constant 64 : i32
    %167 = tpu.dynamic_rotate %165 by %c64_i32_66 dim 1 : vector<2x128xf32>, i32 -> vector<2x128xf32>
    %c32_i32_67 = arith.constant 32 : i32
    %168 = tpu.dynamic_rotate %164 by %c32_i32_67 dim 1 : vector<2x128xf32>, i32 -> vector<2x128xf32>
    %169 = arith.mulf %166, %126 : vector<2x128xf32>
    %170 = arith.mulf %164, %167 : vector<2x128xf32>
    %171 = arith.addf %169, %170 : vector<2x128xf32>
    %172 = math.tanh %171 : vector<2x128xf32>
    %173 = arith.mulf %168, %172 : vector<2x128xf32>
    %174 = arith.mulf %173, %12 : vector<2x128xf32>
    %c16_i32_68 = arith.constant 16 : i32
    %175 = tpu.dynamic_rotate %174 by %c16_i32_68 dim 1 : vector<2x128xf32>, i32 -> vector<2x128xf32>
    %176 = arith.addf %151, %175 : vector<2x128xf32>
    %177 = arith.truncf %176 : vector<2x128xf32> to vector<2x128xbf16>
    %cst_69 = arith.constant dense<0.000000e+00> : vector<2x128xf32>
    %178 = tpu.matmul %177, %1, %cst_69 {dimension_numbers = #tpu.dot_dimension_numbers<[1], [0], [0], [1], [0, 0, 1, 1], [], []>} : vector<2x128xbf16>, vector<128x128xbf16>, vector<2x128xf32> -> vector<2x128xf32>
    %179 = arith.addf %178, %7 : vector<2x128xf32>
    %cst_70 = arith.constant 5.000000e-01 : f32
    %180 = vector.broadcast %cst_70 : f32 to vector<2x128xf32>
    %181 = arith.mulf %180, %179 : vector<2x128xf32>
    %182 = math.tanh %181 : vector<2x128xf32>
    %cst_71 = arith.constant 5.000000e-01 : f32
    %183 = vector.broadcast %cst_71 : f32 to vector<2x128xf32>
    %184 = arith.mulf %183, %182 : vector<2x128xf32>
    %cst_72 = arith.constant 5.000000e-01 : f32
    %185 = vector.broadcast %cst_72 : f32 to vector<2x128xf32>
    %186 = arith.addf %184, %185 : vector<2x128xf32>
    %187 = math.tanh %179 : vector<2x128xf32>
    %c96_i32_73 = arith.constant 96 : i32
    %188 = tpu.dynamic_rotate %186 by %c96_i32_73 dim 1 : vector<2x128xf32>, i32 -> vector<2x128xf32>
    %c64_i32_74 = arith.constant 64 : i32
    %189 = tpu.dynamic_rotate %187 by %c64_i32_74 dim 1 : vector<2x128xf32>, i32 -> vector<2x128xf32>
    %c32_i32_75 = arith.constant 32 : i32
    %190 = tpu.dynamic_rotate %186 by %c32_i32_75 dim 1 : vector<2x128xf32>, i32 -> vector<2x128xf32>
    %191 = arith.mulf %188, %148 : vector<2x128xf32>
    %192 = arith.mulf %186, %189 : vector<2x128xf32>
    %193 = arith.addf %191, %192 : vector<2x128xf32>
    %194 = math.tanh %193 : vector<2x128xf32>
    %195 = arith.mulf %190, %194 : vector<2x128xf32>
    %196 = arith.mulf %195, %12 : vector<2x128xf32>
    %c0_76 = arith.constant 0 : index
    %c0_77 = arith.constant 0 : index
    %197 = vector.load %arg5[%c0_76, %c0_77] : memref<1x128xf32, #tpu.memory_space<vmem>>, vector<1x128xf32>
    %198 = vector.broadcast %197 : vector<1x128xf32> to vector<2x128xf32>
    %199 = arith.mulf %196, %198 : vector<2x128xf32>
    %cst_78 = arith.constant dense<0.000000e+00> : vector<2xf32>
    %200 = vector.multi_reduction <add>, %199, %cst_78 [1] : vector<2x128xf32> to vector<2xf32>
    %201 = vector.shape_cast %200 : vector<2xf32> to vector<2x1xf32>
    %c0_79 = arith.constant 0 : index
    %c0_80 = arith.constant 0 : index
    %202 = vector.load %arg6[%c0_79, %c0_80] : memref<1x1xf32, #tpu.memory_space<vmem>>, vector<1x1xf32>
    %203 = vector.broadcast %202 : vector<1x1xf32> to vector<2x1xf32>
    %204 = arith.addf %201, %203 : vector<2x1xf32>
    %c0_81 = arith.constant 0 : index
    %c0_82 = arith.constant 0 : index
    %205 = vector.load %arg7[%c0_81, %c0_82] : memref<2x1xf32, #tpu.memory_space<vmem>>, vector<2x1xf32>
    tpu.vector_store %arg7[%c0_81, %c0_82], %204 {strides = array<i32>} : memref<2x1xf32, #tpu.memory_space<vmem>>, vector<2x1xf32>,
    return
  }
}

</mosaic_0001>

<llo_original>
// kernel: tpu_custom_call.1
$region0: #{tpu_custom_call.1}
  #allocation0 [shape = 'u32[]', space=smem, size = 0x4, offset = 0x4, fixed_abs, tag = 'smem constant byte address 0x4 - core index']
  #allocation1 [shape = 'u32[144,128]{1,0:T(1,128)}', space=vmem, size = 0x12000, scoped, tag = 'internal scratch']
  #allocation2 [shape = 'f32[1,1]{1,0:T(1,128)S(1)}', space=vmem, size = 0x200, scoped, tag = 'scoped memory for tpu_custom_call.1']
  %s0 = inlined_call_operand.hbm [shape: f32[4,2,128], index: 0, kind: input, shape index: {}]
  %s1 = inlined_call_operand.hbm [shape: bf16[128,128], index: 1, kind: input, shape index: {}]
  %s2 = inlined_call_operand.vmem [shape: f32[1,128], index: 2, kind: input, shape index: {}]
  %s3 = inlined_call_operand.hbm [shape: bf16[128,128], index: 3, kind: input, shape index: {}]
  %s4 = inlined_call_operand.vmem [shape: f32[1,128], index: 4, kind: input, shape index: {}]
  %s5 = inlined_call_operand.vmem [shape: f32[1,128], index: 5, kind: input, shape index: {}]
  %s6 = inlined_call_operand.<no memory space> [shape: f32[1,1], index: 6, kind: input, shape index: {}]
  %s7 = inlined_call_operand.vmem [shape: f32[2,1], index: 7, kind: output, shape index: {}]
  %s8 = sld [smem:[#allocation0]]
  $region50: #{tpu_custom_call.1} parent=0
    _
  %s10 = ssub.s32 1, %s8
  %s11 = scalar_select 0, %s10, %s8
  %v12 = vstv %s6
  %13 = vst [vmem:[#allocation2] sm:$0x1] %v12
  $region1: #{tpu_custom_call.1} parent=0
    #allocation3 [shape = 'u8[4096]{0}', space=vmem, size = 0x1000, scoped, tag = 'input window, operand 0, single buffered']
    #allocation4 [shape = 's32[1]{0}', space=sflag, size = 0x4, scoped, tag = 'scoped memory for tpu_custom_call.1']
    #allocation5 [shape = 'u8[32768]{0}', space=vmem, size = 0x8000, scoped, tag = 'input window, operand 1, single buffered']
    #allocation6 [shape = 's32[1]{0}', space=sflag, size = 0x4, scoped, tag = 'scoped memory for tpu_custom_call.1']
    #allocation7 [shape = 'u8[32768]{0}', space=vmem, size = 0x8000, scoped, tag = 'input window, operand 3, single buffered']
    %14 = vsyncpa [#allocation4], 0
    %15 = vsyncpa [#allocation6], 0
    // Predicated region
    $region2: #{tpu_custom_call.1} parent=1 // pred_check
      _
    $region3: #{tpu_custom_call.1} parent=1 // pred_check_branch
      %17 = sbr.rel (0) target = $region5
    $region4: #{tpu_custom_call.1} parent=1 // pred_region
      %s19 = ssub.s32 128, 128
      %20 = vsyncadd [#allocation4], %s19
      %s21 = sshll.u32 [#allocation3], 4
      %s22 = int_to_ptr.vmem [resolvable:$true] %s21
      %27 = dma.hbm_to_vmem [thread:$0]  %s0, 128, %s22, [#allocation4], 32, 32, 2
    $region5: #{tpu_custom_call.1} parent=1 // pred_fallthru
      _
    // Predicated region
    $region6: #{tpu_custom_call.1} parent=1 // pred_check
      _
    $region7: #{tpu_custom_call.1} parent=1 // pred_check_branch
      %29 = sbr.rel (0) target = $region9
    $region8: #{tpu_custom_call.1} parent=1 // pred_region
      %s31 = ssub.s32 1024, 1024
      %32 = vsyncadd [#allocation6], %s31
      %s33 = sshll.u32 [#allocation5], 4
      %s34 = int_to_ptr.vmem [resolvable:$true] %s33
      %39 = dma.hbm_to_vmem [thread:$0]  %s1, 1024, %s34, [#allocation6], 64, 64, 4
    $region9: #{tpu_custom_call.1} parent=1 // pred_fallthru
      _
    // Predicated region
    $region10: #{tpu_custom_call.1} parent=1 // pred_check
      _
    $region11: #{tpu_custom_call.1} parent=1 // pred_check_branch
      %41 = sbr.rel (0) target = $region13
    $region12: #{tpu_custom_call.1} parent=1 // pred_region
      _
    $region13: #{tpu_custom_call.1} parent=1 // pred_fallthru
      _
    // Predicated region
    $region14: #{tpu_custom_call.1} parent=1 // pred_check
      _
    $region15: #{tpu_custom_call.1} parent=1 // pred_check_branch
      %43 = sbr.rel (0) target = $region17
    $region16: #{tpu_custom_call.1} parent=1 // pred_region
      %s45 = ssub.s32 1024, 1024
      %46 = vsyncadd [#allocation6], %s45
      %s47 = sshll.u32 [#allocation7], 4
      %s48 = int_to_ptr.vmem [resolvable:$true] %s47
      %53 = dma.hbm_to_vmem [thread:$0]  %s3, 1024, %s48, [#allocation6], 64, 64, 4
    $region17: #{tpu_custom_call.1} parent=1 // pred_fallthru
      _
    // Predicated region
    $region18: #{tpu_custom_call.1} parent=1 // pred_check
      _
    $region19: #{tpu_custom_call.1} parent=1 // pred_check_branch
      %55 = sbr.rel (0) target = $region21
    $region20: #{tpu_custom_call.1} parent=1 // pred_region
      _
    $region21: #{tpu_custom_call.1} parent=1 // pred_fallthru
      _
    // Predicated region
    $region22: #{tpu_custom_call.1} parent=1 // pred_check
      _
    $region23: #{tpu_custom_call.1} parent=1 // pred_check_branch
      %57 = sbr.rel (0) target = $region25
    $region24: #{tpu_custom_call.1} parent=1 // pred_region
      _
    $region25: #{tpu_custom_call.1} parent=1 // pred_fallthru
      _
    // Predicated region
    $region26: #{tpu_custom_call.1} parent=1 // pred_check
      _
    $region27: #{tpu_custom_call.1} parent=1 // pred_check_branch
      %59 = sbr.rel (0) target = $region29
    $region28: #{tpu_custom_call.1} parent=1 // pred_region
      _
    $region29: #{tpu_custom_call.1} parent=1 // pred_fallthru
      _
    // Predicated region
    $region30: #{tpu_custom_call.1} parent=1 // pred_check
      _
    $region31: #{tpu_custom_call.1} parent=1 // pred_check_branch
      %61 = sbr.rel (0) target = $region33
    $region32: #{tpu_custom_call.1} parent=1 // pred_region
      %62 = dma.done [#allocation4], 128
    $region33: #{tpu_custom_call.1} parent=1 // pred_fallthru
      _
    // Predicated region
    $region34: #{tpu_custom_call.1} parent=1 // pred_check
      _
    $region35: #{tpu_custom_call.1} parent=1 // pred_check_branch
      %64 = sbr.rel (0) target = $region37
    $region36: #{tpu_custom_call.1} parent=1 // pred_region
      %65 = dma.done [#allocation6], 1024
    $region37: #{tpu_custom_call.1} parent=1 // pred_fallthru
      _
    // Predicated region
    $region38: #{tpu_custom_call.1} parent=1 // pred_check
      _
    $region39: #{tpu_custom_call.1} parent=1 // pred_check_branch
      %67 = sbr.rel (0) target = $region41
    $region40: #{tpu_custom_call.1} parent=1 // pred_region
      %68 = dma.done [#allocation6], 1024
    $region41: #{tpu_custom_call.1} parent=1 // pred_fallthru
      _
    %v70 = vld [vmem:[#allocation5] sm:$0xf]
    %v71 = vld [vmem:[#allocation5 + $0x4] sm:$0xf]
    %v72 = vld [vmem:[#allocation5 + $0x8] sm:$0xf]
    %v73 = vld [vmem:[#allocation5 + $0xc] sm:$0xf]
    %v74 = vld [vmem:[#allocation5 + $0x10] sm:$0xf]
    %v75 = vld [vmem:[#allocation5 + $0x14] sm:$0xf]
    %v76 = vld [vmem:[#allocation5 + $0x18] sm:$0xf]
    %v77 = vld [vmem:[#allocation5 + $0x1c] sm:$0xf]
    %v78 = vld [vmem:[#allocation5 + $0x20] sm:$0xf]
    %v79 = vld [vmem:[#allocation5 + $0x24] sm:$0xf]
    %v80 = vld [vmem:[#allocation5 + $0x28] sm:$0xf]
    %v81 = vld [vmem:[#allocation5 + $0x2c] sm:$0xf]
    %v82 = vld [vmem:[#allocation5 + $0x30] sm:$0xf]
    %v83 = vld [vmem:[#allocation5 + $0x34] sm:$0xf]
    %v84 = vld [vmem:[#allocation5 + $0x38] sm:$0xf]
    %v85 = vld [vmem:[#allocation5 + $0x3c] sm:$0xf]
    %v86 = vld [vmem:[#allocation7] sm:$0xf]
    %v87 = vld [vmem:[#allocation7 + $0x4] sm:$0xf]
    %v88 = vld [vmem:[#allocation7 + $0x8] sm:$0xf]
    %v89 = vld [vmem:[#allocation7 + $0xc] sm:$0xf]
    %v90 = vld [vmem:[#allocation7 + $0x10] sm:$0xf]
    %v91 = vld [vmem:[#allocation7 + $0x14] sm:$0xf]
    %v92 = vld [vmem:[#allocation7 + $0x18] sm:$0xf]
    %v93 = vld [vmem:[#allocation7 + $0x1c] sm:$0xf]
    %v94 = vld [vmem:[#allocation7 + $0x20] sm:$0xf]
    %v95 = vld [vmem:[#allocation7 + $0x24] sm:$0xf]
    %v96 = vld [vmem:[#allocation7 + $0x28] sm:$0xf]
    %v97 = vld [vmem:[#allocation7 + $0x2c] sm:$0xf]
    %v98 = vld [vmem:[#allocation7 + $0x30] sm:$0xf]
    %v99 = vld [vmem:[#allocation7 + $0x34] sm:$0xf]
    %v100 = vld [vmem:[#allocation7 + $0x38] sm:$0xf]
    %v101 = vld [vmem:[#allocation7 + $0x3c] sm:$0xf]
    %v102 = vld [vmem:[%s2] sm:$0x1]
    %v104 = vlaneseq
    %v105 = vshrl.u32 %v104, 7
    %v106 = vsub.s32 0, %v105
    %v107 = vrot.slane %v102, %v106
    %v109 = vld [vmem:[%s4] sm:$0x1]
    %v111 = vlaneseq
    %v112 = vshrl.u32 %v111, 7
    %v113 = vsub.s32 0, %v112
    %v114 = vrot.slane %v109, %v113
    %v116 = vlaneseq
    %v117 = vand.u32 %v116, 127
    %vm118 = vcmp.lt.s32.totalorder %v117, 16
    %v119 = vsel %vm118, 1, 0
    %v120 = vcvt.s32.f32 %v119
    %v121 = vld [vmem:[#allocation3] sm:$0x3]
    %v122 = vadd.f32 %v121, 0.0
    %v123 = vpack.c.bf16 %v122, %v122
    %v140 = vunpack.c.l.b16 %v70
    %v141 = vunpack.c.l.b16 %v71
    %v142 = vunpack.c.l.b16 %v72
    %v143 = vunpack.c.l.b16 %v73
    %v144 = vunpack.c.l.b16 %v74
    %v145 = vunpack.c.l.b16 %v75
    %v146 = vunpack.c.l.b16 %v76
    %v147 = vunpack.c.l.b16 %v77
    %v148 = vunpack.c.l.b16 %v78
    %v149 = vunpack.c.l.b16 %v79
    %v150 = vunpack.c.l.b16 %v80
    %v151 = vunpack.c.l.b16 %v81
    %v152 = vunpack.c.l.b16 %v82
    %v153 = vunpack.c.l.b16 %v83
    %v154 = vunpack.c.l.b16 %v84
    %v155 = vunpack.c.l.b16 %v85
    %v156 = vpack.c.b16 %v141, %v140
    %v157 = vpack.c.b16 %v143, %v142
    %v158 = vpack.c.b16 %v145, %v144
    %v159 = vpack.c.b16 %v147, %v146
    %v160 = vpack.c.b16 %v149, %v148
    %v161 = vpack.c.b16 %v151, %v150
    %v162 = vpack.c.b16 %v153, %v152
    %v163 = vpack.c.b16 %v155, %v154
    %172 = vmatprep.subr.bf16.mxu0 0
    %173 = vmatpush1.bf16.msra.mxu0 %v156
    %174 = vmatprep.subr.bf16.mxu0 0
    %175 = vmatpush1.bf16.msra.mxu0 %v157
    %176 = vmatprep.subr.bf16.mxu0 0
    %177 = vmatpush1.bf16.msra.mxu0 %v158
    %178 = vmatprep.subr.bf16.mxu0 0
    %179 = vmatpush1.bf16.msra.mxu0 %v159
    %180 = vmatprep.subr.bf16.mxu0 0
    %181 = vmatpush1.bf16.msra.mxu0 %v160
    %182 = vmatprep.subr.bf16.mxu0 0
    %183 = vmatpush1.bf16.msra.mxu0 %v161
    %184 = vmatprep.subr.bf16.mxu0 0
    %185 = vmatpush1.bf16.msra.mxu0 %v162
    %186 = vmatprep.subr.bf16.mxu0 0
    %187 = vmatpush1.bf16.msra.mxu0 %v163
    %188 = vmatprep.subr.bf16.mxu0 0
    %189 = vmatpush1.bf16.msra.mxu0 0
    %190 = vmatprep.subr.bf16.mxu0 0
    %191 = vmatpush1.bf16.msra.mxu0 0
    %192 = vmatprep.subr.bf16.mxu0 0
    %193 = vmatpush1.bf16.msra.mxu0 0
    %194 = vmatprep.subr.bf16.mxu0 0
    %195 = vmatpush1.bf16.msra.mxu0 0
    %196 = vmatprep.subr.bf16.mxu0 0
    %197 = vmatpush1.bf16.msra.mxu0 0
    %198 = vmatprep.subr.bf16.mxu0 0
    %199 = vmatpush1.bf16.msra.mxu0 0
    %200 = vmatprep.subr.bf16.mxu0 0
    %201 = vmatpush1.bf16.msra.mxu0 0
    %202 = vmatprep.subr.bf16.mxu0 0
    %203 = vmatpush1.bf16.msra.mxu0 0
    %204 = vmatprep.mubr.bf16.mxu0 0
    %205 = vmatmul.mubr.bf16.gmra.mrb[0].mxu0 %v123
    %v206 = vpop.f32.mrb[0].mxu0
    %v207 = vadd.f32 %v107, %v206
    %v208 = vpop.f32.mrb[0].mxu0
    %v209 = vpop.f32.mrb[0].mxu0
    %v210 = vpop.f32.mrb[0].mxu0
    %211 = vdwg.mxu0
    %v212 = vmul.f32 %v207, 0.5
    %v213 = vtanh.pop %v212
    %v214 = vmul.f32 %v213, 0.5
    %v215 = vadd.f32 %v214, 0.5
    %v216 = vtanh.pop %v207
    %217 = vrot.lane.b32.xlu0 %v215, 96
    %v218 = vpop.permute.xlu0 %217
    %219 = vrot.lane.b32.xlu0 %v216, 64
    %v220 = vpop.permute.xlu0 %219
    %221 = vrot.lane.b32.xlu0 %v215, 32
    %v222 = vpop.permute.xlu0 %221
    %v223 = vmul.f32 %v218, 0.0
    %v224 = vmul.f32 %v215, %v220
    %v225 = vadd.f32 %v223, %v224
    %v226 = vtanh.pop %v225
    %v227 = vmul.f32 %v222, %v226
    %v228 = vmul.f32 %v227, %v120
    %229 = vrot.lane.b32.xlu0 %v228, 16
    %v230 = vpop.permute.xlu0 %229
    %v231 = vadd.f32 %v230, 0.0
    %v232 = vpack.c.bf16 %v231, %v231
    %v249 = vunpack.c.l.b16 %v86
    %v250 = vunpack.c.l.b16 %v87
    %v251 = vunpack.c.l.b16 %v88
    %v252 = vunpack.c.l.b16 %v89
    %v253 = vunpack.c.l.b16 %v90
    %v254 = vunpack.c.l.b16 %v91
    %v255 = vunpack.c.l.b16 %v92
    %v256 = vunpack.c.l.b16 %v93
    %v257 = vunpack.c.l.b16 %v94
    %v258 = vunpack.c.l.b16 %v95
    %v259 = vunpack.c.l.b16 %v96
    %v260 = vunpack.c.l.b16 %v97
    %v261 = vunpack.c.l.b16 %v98
    %v262 = vunpack.c.l.b16 %v99
    %v263 = vunpack.c.l.b16 %v100
    %v264 = vunpack.c.l.b16 %v101
    %v265 = vpack.c.b16 %v250, %v249
    %v266 = vpack.c.b16 %v252, %v251
    %v267 = vpack.c.b16 %v254, %v253
    %v268 = vpack.c.b16 %v256, %v255
    %v269 = vpack.c.b16 %v258, %v257
    %v270 = vpack.c.b16 %v260, %v259
    %v271 = vpack.c.b16 %v262, %v261
    %v272 = vpack.c.b16 %v264, %v263
    %281 = vmatprep.subr.bf16.mxu0 0
    %282 = vmatpush1.bf16.msra.mxu0 %v265
    %283 = vmatprep.subr.bf16.mxu0 0
    %284 = vmatpush1.bf16.msra.mxu0 %v266
    %285 = vmatprep.subr.bf16.mxu0 0
    %286 = vmatpush1.bf16.msra.mxu0 %v267
    %287 = vmatprep.subr.bf16.mxu0 0
    %288 = vmatpush1.bf16.msra.mxu0 %v268
    %289 = vmatprep.subr.bf16.mxu0 0
    %290 = vmatpush1.bf16.msra.mxu0 %v269
    %291 = vmatprep.subr.bf16.mxu0 0
    %292 = vmatpush1.bf16.msra.mxu0 %v270
    %293 = vmatprep.subr.bf16.mxu0 0
    %294 = vmatpush1.bf16.msra.mxu0 %v271
    %295 = vmatprep.subr.bf16.mxu0 0
    %296 = vmatpush1.bf16.msra.mxu0 %v272
    %297 = vmatprep.subr.bf16.mxu0 0
    %298 = vmatpush1.bf16.msra.mxu0 0
    %299 = vmatprep.subr.bf16.mxu0 0
    %300 = vmatpush1.bf16.msra.mxu0 0
    %301 = vmatprep.subr.bf16.mxu0 0
    %302 = vmatpush1.bf16.msra.mxu0 0
    %303 = vmatprep.subr.bf16.mxu0 0
    %304 = vmatpush1.bf16.msra.mxu0 0
    %305 = vmatprep.subr.bf16.mxu0 0
    %306 = vmatpush1.bf16.msra.mxu0 0
    %307 = vmatprep.subr.bf16.mxu0 0
    %308 = vmatpush1.bf16.msra.mxu0 0
    %309 = vmatprep.subr.bf16.mxu0 0
    %310 = vmatpush1.bf16.msra.mxu0 0
    %311 = vmatprep.subr.bf16.mxu0 0
    %312 = vmatpush1.bf16.msra.mxu0 0
    %313 = vmatprep.mubr.bf16.mxu0 0
    %314 = vmatmul.mubr.bf16.gmra.mrb[0].mxu0 %v232
    %v315 = vpop.f32.mrb[0].mxu0
    %v316 = vadd.f32 %v114, %v315
    %v317 = vpop.f32.mrb[0].mxu0
    %v318 = vpop.f32.mrb[0].mxu0
    %v319 = vpop.f32.mrb[0].mxu0
    %320 = vdwg.mxu0
    %v321 = vmul.f32 %v316, 0.5
    %v322 = vtanh.pop %v321
    %v323 = vmul.f32 %v322, 0.5
    %v324 = vadd.f32 %v323, 0.5
    %v325 = vtanh.pop %v316
    %326 = vrot.lane.b32.xlu0 %v324, 96
    %v327 = vpop.permute.xlu0 %326
    %328 = vrot.lane.b32.xlu0 %v325, 64
    %v329 = vpop.permute.xlu0 %328
    %330 = vrot.lane.b32.xlu0 %v324, 32
    %v331 = vpop.permute.xlu0 %330
    %v332 = vmul.f32 %v327, 0.0
    %v333 = vmul.f32 %v324, %v329
    %v334 = vadd.f32 %v332, %v333
    %v335 = vtanh.pop %v334
    %v336 = vmul.f32 %v331, %v335
    %v337 = vmul.f32 %v336, %v120
    %s338 = scalar_lea.vmem [#allocation3], 2
    %v339 = vld [vmem:[%s338] sm:$0x3]
    %v340 = vadd.f32 %v228, %v339
    %v341 = vpack.c.bf16 %v340, %v340
    %342 = vmatprep.subr.bf16.mxu0 0
    %343 = vmatpush1.bf16.msra.mxu0 %v156
    %344 = vmatprep.subr.bf16.mxu0 0
    %345 = vmatpush1.bf16.msra.mxu0 %v157
    %346 = vmatprep.subr.bf16.mxu0 0
    %347 = vmatpush1.bf16.msra.mxu0 %v158
    %348 = vmatprep.subr.bf16.mxu0 0
    %349 = vmatpush1.bf16.msra.mxu0 %v159
    %350 = vmatprep.subr.bf16.mxu0 0
    %351 = vmatpush1.bf16.msra.mxu0 %v160
    %352 = vmatprep.subr.bf16.mxu0 0
    %353 = vmatpush1.bf16.msra.mxu0 %v161
    %354 = vmatprep.subr.bf16.mxu0 0
    %355 = vmatpush1.bf16.msra.mxu0 %v162
    %356 = vmatprep.subr.bf16.mxu0 0
    %357 = vmatpush1.bf16.msra.mxu0 %v163
    %358 = vmatprep.subr.bf16.mxu0 0
    %359 = vmatpush1.bf16.msra.mxu0 0
    %360 = vmatprep.subr.bf16.mxu0 0
    %361 = vmatpush1.bf16.msra.mxu0 0
    %362 = vmatprep.subr.bf16.mxu0 0
    %363 = vmatpush1.bf16.msra.mxu0 0
    %364 = vmatprep.subr.bf16.mxu0 0
    %365 = vmatpush1.bf16.msra.mxu0 0
    %366 = vmatprep.subr.bf16.mxu0 0
    %367 = vmatpush1.bf16.msra.mxu0 0
    %368 = vmatprep.subr.bf16.mxu0 0
    %369 = vmatpush1.bf16.msra.mxu0 0
    %370 = vmatprep.subr.bf16.mxu0 0
    %371 = vmatpush1.bf16.msra.mxu0 0
    %372 = vmatprep.subr.bf16.mxu0 0
    %373 = vmatpush1.bf16.msra.mxu0 0
    %374 = vmatprep.mubr.bf16.mxu0 0
    %375 = vmatmul.mubr.bf16.gmra.mrb[0].mxu0 %v341
    %v376 = vpop.f32.mrb[0].mxu0
    %v377 = vadd.f32 %v107, %v376
    %v378 = vpop.f32.mrb[0].mxu0
    %v379 = vpop.f32.mrb[0].mxu0
    %v380 = vpop.f32.mrb[0].mxu0
    %381 = vdwg.mxu0
    %v382 = vmul.f32 %v377, 0.5
    %v383 = vtanh.pop %v382
    %v384 = vmul.f32 %v383, 0.5
    %v385 = vadd.f32 %v384, 0.5
    %v386 = vtanh.pop %v377
    %387 = vrot.lane.b32.xlu0 %v385, 96
    %v388 = vpop.permute.xlu0 %387
    %389 = vrot.lane.b32.xlu0 %v386, 64
    %v390 = vpop.permute.xlu0 %389
    %391 = vrot.lane.b32.xlu0 %v385, 32
    %v392 = vpop.permute.xlu0 %391
    %v393 = vmul.f32 %v388, %v225
    %v394 = vmul.f32 %v385, %v390
    %v395 = vadd.f32 %v393, %v394
    %v396 = vtanh.pop %v395
    %v397 = vmul.f32 %v392, %v396
    %v398 = vmul.f32 %v397, %v120
    %399 = vrot.lane.b32.xlu0 %v398, 16
    %v400 = vpop.permute.xlu0 %399
    %v401 = vadd.f32 %v337, %v400
    %v402 = vpack.c.bf16 %v401, %v401
    %403 = vmatprep.subr.bf16.mxu0 0
    %404 = vmatpush1.bf16.msra.mxu0 %v265
    %405 = vmatprep.subr.bf16.mxu0 0
    %406 = vmatpush1.bf16.msra.mxu0 %v266
    %407 = vmatprep.subr.bf16.mxu0 0
    %408 = vmatpush1.bf16.msra.mxu0 %v267
    %409 = vmatprep.subr.bf16.mxu0 0
    %410 = vmatpush1.bf16.msra.mxu0 %v268
    %411 = vmatprep.subr.bf16.mxu0 0
    %412 = vmatpush1.bf16.msra.mxu0 %v269
    %413 = vmatprep.subr.bf16.mxu0 0
    %414 = vmatpush1.bf16.msra.mxu0 %v270
    %415 = vmatprep.subr.bf16.mxu0 0
    %416 = vmatpush1.bf16.msra.mxu0 %v271
    %417 = vmatprep.subr.bf16.mxu0 0
    %418 = vmatpush1.bf16.msra.mxu0 %v272
    %419 = vmatprep.subr.bf16.mxu0 0
    %420 = vmatpush1.bf16.msra.mxu0 0
    %421 = vmatprep.subr.bf16.mxu0 0
    %422 = vmatpush1.bf16.msra.mxu0 0
    %423 = vmatprep.subr.bf16.mxu0 0
    %424 = vmatpush1.bf16.msra.mxu0 0
    %425 = vmatprep.subr.bf16.mxu0 0
    %426 = vmatpush1.bf16.msra.mxu0 0
    %427 = vmatprep.subr.bf16.mxu0 0
    %428 = vmatpush1.bf16.msra.mxu0 0
    %429 = vmatprep.subr.bf16.mxu0 0
    %430 = vmatpush1.bf16.msra.mxu0 0
    %431 = vmatprep.subr.bf16.mxu0 0
    %432 = vmatpush1.bf16.msra.mxu0 0
    %433 = vmatprep.subr.bf16.mxu0 0
    %434 = vmatpush1.bf16.msra.mxu0 0
    %435 = vmatprep.mubr.bf16.mxu0 0
    %436 = vmatmul.mubr.bf16.gmra.mrb[0].mxu0 %v402
    %v437 = vpop.f32.mrb[0].mxu0
    %v438 = vadd.f32 %v114, %v437
    %v439 = vpop.f32.mrb[0].mxu0
    %v440 = vpop.f32.mrb[0].mxu0
    %v441 = vpop.f32.mrb[0].mxu0
    %442 = vdwg.mxu0
    %v443 = vmul.f32 %v438, 0.5
    %v444 = vtanh.pop %v443
    %v445 = vmul.f32 %v444, 0.5
    %v446 = vadd.f32 %v445, 0.5
    %v447 = vtanh.pop %v438
    %448 = vrot.lane.b32.xlu0 %v446, 96
    %v449 = vpop.permute.xlu0 %448
    %450 = vrot.lane.b32.xlu0 %v447, 64
    %v451 = vpop.permute.xlu0 %450
    %452 = vrot.lane.b32.xlu0 %v446, 32
    %v453 = vpop.permute.xlu0 %452
    %v454 = vmul.f32 %v449, %v334
    %v455 = vmul.f32 %v446, %v451
    %v456 = vadd.f32 %v454, %v455
    %v457 = vtanh.pop %v456
    %v458 = vmul.f32 %v453, %v457
    %v459 = vmul.f32 %v458, %v120
    %s460 = scalar_lea.vmem [#allocation3], 4
    %v461 = vld [vmem:[%s460] sm:$0x3]
    %v462 = vadd.f32 %v398, %v461
    %v463 = vpack.c.bf16 %v462, %v462
    %464 = vmatprep.subr.bf16.mxu0 0
    %465 = vmatpush1.bf16.msra.mxu0 %v156
    %466 = vmatprep.subr.bf16.mxu0 0
    %467 = vmatpush1.bf16.msra.mxu0 %v157
    %468 = vmatprep.subr.bf16.mxu0 0
    %469 = vmatpush1.bf16.msra.mxu0 %v158
    %470 = vmatprep.subr.bf16.mxu0 0
    %471 = vmatpush1.bf16.msra.mxu0 %v159
    %472 = vmatprep.subr.bf16.mxu0 0
    %473 = vmatpush1.bf16.msra.mxu0 %v160
    %474 = vmatprep.subr.bf16.mxu0 0
    %475 = vmatpush1.bf16.msra.mxu0 %v161
    %476 = vmatprep.subr.bf16.mxu0 0
    %477 = vmatpush1.bf16.msra.mxu0 %v162
    %478 = vmatprep.subr.bf16.mxu0 0
    %479 = vmatpush1.bf16.msra.mxu0 %v163
    %480 = vmatprep.subr.bf16.mxu0 0
    %481 = vmatpush1.bf16.msra.mxu0 0
    %482 = vmatprep.subr.bf16.mxu0 0
    %483 = vmatpush1.bf16.msra.mxu0 0
    %484 = vmatprep.subr.bf16.mxu0 0
    %485 = vmatpush1.bf16.msra.mxu0 0
    %486 = vmatprep.subr.bf16.mxu0 0
    %487 = vmatpush1.bf16.msra.mxu0 0
    %488 = vmatprep.subr.bf16.mxu0 0
    %489 = vmatpush1.bf16.msra.mxu0 0
    %490 = vmatprep.subr.bf16.mxu0 0
    %491 = vmatpush1.bf16.msra.mxu0 0
    %492 = vmatprep.subr.bf16.mxu0 0
    %493 = vmatpush1.bf16.msra.mxu0 0
    %494 = vmatprep.subr.bf16.mxu0 0
    %495 = vmatpush1.bf16.msra.mxu0 0
    %496 = vmatprep.mubr.bf16.mxu0 0
    %497 = vmatmul.mubr.bf16.gmra.mrb[0].mxu0 %v463
    %v498 = vpop.f32.mrb[0].mxu0
    %v499 = vadd.f32 %v107, %v498
    %v500 = vpop.f32.mrb[0].mxu0
    %v501 = vpop.f32.mrb[0].mxu0
    %v502 = vpop.f32.mrb[0].mxu0
    %503 = vdwg.mxu0
    %v504 = vmul.f32 %v499, 0.5
    %v505 = vtanh.pop %v504
    %v506 = vmul.f32 %v505, 0.5
    %v507 = vadd.f32 %v506, 0.5
    %v508 = vtanh.pop %v499
    %509 = vrot.lane.b32.xlu0 %v507, 96
    %v510 = vpop.permute.xlu0 %509
    %511 = vrot.lane.b32.xlu0 %v508, 64
    %v512 = vpop.permute.xlu0 %511
    %513 = vrot.lane.b32.xlu0 %v507, 32
    %v514 = vpop.permute.xlu0 %513
    %v515 = vmul.f32 %v510, %v395
    %v516 = vmul.f32 %v507, %v512
    %v517 = vadd.f32 %v515, %v516
    %v518 = vtanh.pop %v517
    %v519 = vmul.f32 %v514, %v518
    %v520 = vmul.f32 %v519, %v120
    %521 = vrot.lane.b32.xlu0 %v520, 16
    %v522 = vpop.permute.xlu0 %521
    %v523 = vadd.f32 %v459, %v522
    %v524 = vpack.c.bf16 %v523, %v523
    %525 = vmatprep.subr.bf16.mxu0 0
    %526 = vmatpush1.bf16.msra.mxu0 %v265
    %527 = vmatprep.subr.bf16.mxu0 0
    %528 = vmatpush1.bf16.msra.mxu0 %v266
    %529 = vmatprep.subr.bf16.mxu0 0
    %530 = vmatpush1.bf16.msra.mxu0 %v267
    %531 = vmatprep.subr.bf16.mxu0 0
    %532 = vmatpush1.bf16.msra.mxu0 %v268
    %533 = vmatprep.subr.bf16.mxu0 0
    %534 = vmatpush1.bf16.msra.mxu0 %v269
    %535 = vmatprep.subr.bf16.mxu0 0
    %536 = vmatpush1.bf16.msra.mxu0 %v270
    %537 = vmatprep.subr.bf16.mxu0 0
    %538 = vmatpush1.bf16.msra.mxu0 %v271
    %539 = vmatprep.subr.bf16.mxu0 0
    %540 = vmatpush1.bf16.msra.mxu0 %v272
    %541 = vmatprep.subr.bf16.mxu0 0
    %542 = vmatpush1.bf16.msra.mxu0 0
    %543 = vmatprep.subr.bf16.mxu0 0
    %544 = vmatpush1.bf16.msra.mxu0 0
    %545 = vmatprep.subr.bf16.mxu0 0
    %546 = vmatpush1.bf16.msra.mxu0 0
    %547 = vmatprep.subr.bf16.mxu0 0
    %548 = vmatpush1.bf16.msra.mxu0 0
    %549 = vmatprep.subr.bf16.mxu0 0
    %550 = vmatpush1.bf16.msra.mxu0 0
    %551 = vmatprep.subr.bf16.mxu0 0
    %552 = vmatpush1.bf16.msra.mxu0 0
    %553 = vmatprep.subr.bf16.mxu0 0
    %554 = vmatpush1.bf16.msra.mxu0 0
    %555 = vmatprep.subr.bf16.mxu0 0
    %556 = vmatpush1.bf16.msra.mxu0 0
    %557 = vmatprep.mubr.bf16.mxu0 0
    %558 = vmatmul.mubr.bf16.gmra.mrb[0].mxu0 %v524
    %v559 = vpop.f32.mrb[0].mxu0
    %v560 = vadd.f32 %v114, %v559
    %v561 = vpop.f32.mrb[0].mxu0
    %v562 = vpop.f32.mrb[0].mxu0
    %v563 = vpop.f32.mrb[0].mxu0
    %564 = vdwg.mxu0
    %v565 = vmul.f32 %v560, 0.5
    %v566 = vtanh.pop %v565
    %v567 = vmul.f32 %v566, 0.5
    %v568 = vadd.f32 %v567, 0.5
    %v569 = vtanh.pop %v560
    %570 = vrot.lane.b32.xlu0 %v568, 96
    %v571 = vpop.permute.xlu0 %570
    %572 = vrot.lane.b32.xlu0 %v569, 64
    %v573 = vpop.permute.xlu0 %572
    %574 = vrot.lane.b32.xlu0 %v568, 32
    %v575 = vpop.permute.xlu0 %574
    %v576 = vmul.f32 %v571, %v456
    %v577 = vmul.f32 %v568, %v573
    %v578 = vadd.f32 %v576, %v577
    %v579 = vtanh.pop %v578
    %v580 = vmul.f32 %v575, %v579
    %v581 = vmul.f32 %v580, %v120
    %s582 = scalar_lea.vmem [#allocation3], 6
    %v583 = vld [vmem:[%s582] sm:$0x3]
    %v584 = vadd.f32 %v520, %v583
    %v585 = vpack.c.bf16 %v584, %v584
    %586 = vmatprep.subr.bf16.mxu0 0
    %587 = vmatpush1.bf16.msra.mxu0 %v156
    %588 = vmatprep.subr.bf16.mxu0 0
    %589 = vmatpush1.bf16.msra.mxu0 %v157
    %590 = vmatprep.subr.bf16.mxu0 0
    %591 = vmatpush1.bf16.msra.mxu0 %v158
    %592 = vmatprep.subr.bf16.mxu0 0
    %593 = vmatpush1.bf16.msra.mxu0 %v159
    %594 = vmatprep.subr.bf16.mxu0 0
    %595 = vmatpush1.bf16.msra.mxu0 %v160
    %596 = vmatprep.subr.bf16.mxu0 0
    %597 = vmatpush1.bf16.msra.mxu0 %v161
    %598 = vmatprep.subr.bf16.mxu0 0
    %599 = vmatpush1.bf16.msra.mxu0 %v162
    %600 = vmatprep.subr.bf16.mxu0 0
    %601 = vmatpush1.bf16.msra.mxu0 %v163
    %602 = vmatprep.subr.bf16.mxu0 0
    %603 = vmatpush1.bf16.msra.mxu0 0
    %604 = vmatprep.subr.bf16.mxu0 0
    %605 = vmatpush1.bf16.msra.mxu0 0
    %606 = vmatprep.subr.bf16.mxu0 0
    %607 = vmatpush1.bf16.msra.mxu0 0
    %608 = vmatprep.subr.bf16.mxu0 0
    %609 = vmatpush1.bf16.msra.mxu0 0
    %610 = vmatprep.subr.bf16.mxu0 0
    %611 = vmatpush1.bf16.msra.mxu0 0
    %612 = vmatprep.subr.bf16.mxu0 0
    %613 = vmatpush1.bf16.msra.mxu0 0
    %614 = vmatprep.subr.bf16.mxu0 0
    %615 = vmatpush1.bf16.msra.mxu0 0
    %616 = vmatprep.subr.bf16.mxu0 0
    %617 = vmatpush1.bf16.msra.mxu0 0
    %618 = vmatprep.mubr.bf16.mxu0 0
    %619 = vmatmul.mubr.bf16.gmra.mrb[0].mxu0 %v585
    %v620 = vpop.f32.mrb[0].mxu0
    %v621 = vadd.f32 %v107, %v620
    %v622 = vpop.f32.mrb[0].mxu0
    %v623 = vpop.f32.mrb[0].mxu0
    %v624 = vpop.f32.mrb[0].mxu0
    %625 = vdwg.mxu0
    %v626 = vmul.f32 %v621, 0.5
    %v627 = vtanh.pop %v626
    %v628 = vmul.f32 %v627, 0.5
    %v629 = vadd.f32 %v628, 0.5
    %v630 = vtanh.pop %v621
    %631 = vrot.lane.b32.xlu0 %v629, 96
    %v632 = vpop.permute.xlu0 %631
    %633 = vrot.lane.b32.xlu0 %v630, 64
    %v634 = vpop.permute.xlu0 %633
    %635 = vrot.lane.b32.xlu0 %v629, 32
    %v636 = vpop.permute.xlu0 %635
    %v637 = vmul.f32 %v632, %v517
    %v638 = vmul.f32 %v629, %v634
    %v639 = vadd.f32 %v637, %v638
    %v640 = vtanh.pop %v639
    %v641 = vmul.f32 %v636, %v640
    %v642 = vmul.f32 %v641, %v120
    %643 = vrot.lane.b32.xlu0 %v642, 16
    %v644 = vpop.permute.xlu0 %643
    %v645 = vadd.f32 %v581, %v644
    %v646 = vpack.c.bf16 %v645, %v645
    %647 = vmatprep.subr.bf16.mxu0 0
    %648 = vmatpush1.bf16.msra.mxu0 %v265
    %649 = vmatprep.subr.bf16.mxu0 0
    %650 = vmatpush1.bf16.msra.mxu0 %v266
    %651 = vmatprep.subr.bf16.mxu0 0
    %652 = vmatpush1.bf16.msra.mxu0 %v267
    %653 = vmatprep.subr.bf16.mxu0 0
    %654 = vmatpush1.bf16.msra.mxu0 %v268
    %655 = vmatprep.subr.bf16.mxu0 0
    %656 = vmatpush1.bf16.msra.mxu0 %v269
    %657 = vmatprep.subr.bf16.mxu0 0
    %658 = vmatpush1.bf16.msra.mxu0 %v270
    %659 = vmatprep.subr.bf16.mxu0 0
    %660 = vmatpush1.bf16.msra.mxu0 %v271
    %661 = vmatprep.subr.bf16.mxu0 0
    %662 = vmatpush1.bf16.msra.mxu0 %v272
    %663 = vmatprep.subr.bf16.mxu0 0
    %664 = vmatpush1.bf16.msra.mxu0 0
    %665 = vmatprep.subr.bf16.mxu0 0
    %666 = vmatpush1.bf16.msra.mxu0 0
    %667 = vmatprep.subr.bf16.mxu0 0
    %668 = vmatpush1.bf16.msra.mxu0 0
    %669 = vmatprep.subr.bf16.mxu0 0
    %670 = vmatpush1.bf16.msra.mxu0 0
    %671 = vmatprep.subr.bf16.mxu0 0
    %672 = vmatpush1.bf16.msra.mxu0 0
    %673 = vmatprep.subr.bf16.mxu0 0
    %674 = vmatpush1.bf16.msra.mxu0 0
    %675 = vmatprep.subr.bf16.mxu0 0
    %676 = vmatpush1.bf16.msra.mxu0 0
    %677 = vmatprep.subr.bf16.mxu0 0
    %678 = vmatpush1.bf16.msra.mxu0 0
    %679 = vmatprep.mubr.bf16.mxu0 0
    %680 = vmatmul.mubr.bf16.gmra.mrb[0].mxu0 %v646
    %v681 = vpop.f32.mrb[0].mxu0
    %v682 = vadd.f32 %v114, %v681
    %v683 = vpop.f32.mrb[0].mxu0
    %v684 = vpop.f32.mrb[0].mxu0
    %v685 = vpop.f32.mrb[0].mxu0
    %686 = vdwg.mxu0
    %v687 = vmul.f32 %v682, 0.5
    %v688 = vtanh.pop %v687
    %v689 = vmul.f32 %v688, 0.5
    %v690 = vadd.f32 %v689, 0.5
    %v691 = vtanh.pop %v682
    %692 = vrot.lane.b32.xlu0 %v690, 96
    %v693 = vpop.permute.xlu0 %692
    %694 = vrot.lane.b32.xlu0 %v691, 64
    %v695 = vpop.permute.xlu0 %694
    %696 = vrot.lane.b32.xlu0 %v690, 32
    %v697 = vpop.permute.xlu0 %696
    %v698 = vmul.f32 %v693, %v578
    %v699 = vmul.f32 %v690, %v695
    %v700 = vadd.f32 %v698, %v699
    %v701 = vtanh.pop %v700
    %v702 = vmul.f32 %v697, %v701
    %v703 = vmul.f32 %v702, %v120
    %v704 = vld [vmem:[%s5] sm:$0x1]
    %v706 = vlaneseq
    %v707 = vshrl.u32 %v706, 7
    %v708 = vsub.s32 0, %v707
    %v709 = vrot.slane %v704, %v708
    %v711 = vmul.f32 %v703, %v709
    %vm712 = vcmask 1041408
    %v713 = vsel %vm712, %v711, 0.0
    %714 = vadd.xlane.f32.xlu0 %v713
    %v715 = vpop.xlane.xlu0 %714
    %v716 = vld [vmem:[#allocation2] sm:$0x1]
    %v718 = vlaneseq
    %v719 = vshrl.u32 %v718, 7
    %v720 = vsub.s32 0, %v719
    %v721 = vrot.slane %v716, %v720
    %v723 = vadd.f32 %v715, %v721
    %vm724 = vcmask 1024
    %725 = vst.msk [vmem:[%s7] sm:$0x3] %vm724, %v723
    // Predicated region
    $region42: #{tpu_custom_call.1} parent=1 // pred_check
      _
    $region43: #{tpu_custom_call.1} parent=1 // pred_check_branch
      %727 = sbr.rel (0) target = $region45
    $region44: #{tpu_custom_call.1} parent=1 // pred_region
      _
    $region45: #{tpu_custom_call.1} parent=1 // pred_fallthru
      _
    // Predicated region
    $region46: #{tpu_custom_call.1} parent=1 // pred_check
      _
    $region47: #{tpu_custom_call.1} parent=1 // pred_check_branch
      %729 = sbr.rel (0) target = $region49
    $region48: #{tpu_custom_call.1} parent=1 // pred_region
      _
    $region49: #{tpu_custom_call.1} parent=1 // pred_fallthru
      _
    %730 = vsyncpa [#allocation4], 1
    %731 = vsyncpa [#allocation6], 1

</llo_original>
